<compile_context>
chip_gen: v7x
topology: tpu7x:2x2x1
jax: 0.10.0
libtpu: 0.0.40
codegen_flags: <defaults>
</compile_context>

<pallas_src>
import jax
import jax.numpy as jnp
from jax.experimental import pallas as pl
from jax.experimental.pallas import tpu as pltpu

EPS = 1e-5


def _pick_tile(hw):
    # Largest lane tile (multiple of 128) that divides H*W; fallback = full dim.
    for t in (2048, 1024, 512, 256, 128):
        if hw % t == 0:
            return t
    return hw


def _conv_stats_kernel(x_ref, w_ref, y_ref, sum_ref, sq_ref):
    # x_ref: (1, Cin, T)  w_ref: (Cout, Cin)
    # y_ref: (1, Cout, T) sum_ref / sq_ref: (1, Cout, 1)  [resident across s]
    @pl.when(pl.program_id(1) == 0)
    def _():
        sum_ref[...] = jnp.zeros_like(sum_ref)
        sq_ref[...] = jnp.zeros_like(sq_ref)

    x = x_ref[0].astype(jnp.float32)            # (Cin, T)
    w = w_ref[...].astype(jnp.float32)          # (Cout, Cin)

    # 1x1 conv == channel matmul on the MXU; spatial dim on the lane axis.
    y = jnp.dot(w, x, preferred_element_type=jnp.float32)   # (Cout, T)
    y_ref[...] = y[None].astype(y_ref.dtype)

    # Partial per-channel statistics (f32 accumulation in resident out blocks).
    sum_ref[...] += jnp.sum(y, axis=1, keepdims=True)[None]
    sq_ref[...] += jnp.sum(y * y, axis=1, keepdims=True)[None]


def _bn_relu_kernel(y_ref, scale_ref, shift_ref, o_ref):
    # y_ref: (1, Cout, T)  scale_ref / shift_ref: (Cout, 1)
    y = y_ref[...].astype(jnp.float32)
    scale = scale_ref[...].astype(jnp.float32)[None]
    shift = shift_ref[...].astype(jnp.float32)[None]
    o_ref[...] = jnp.maximum(y * scale + shift, 0.0).astype(o_ref.dtype)


def conv_bn_relu(x_nchw, weight, bias=None):
    """x_nchw: (N, C_in, H, W); weight: (C_out, C_in, 1, 1); bias: (C_out,).

    bias is accepted for API parity but unused: with batch-stat mean
    subtraction and no affine, the conv bias cancels exactly."""
    del bias
    N, C_in, H, W = x_nchw.shape
    C_out = weight.shape[0]
    HW = H * W

    x3 = x_nchw.reshape(N, C_in, HW)            # free reshape, no transpose
    w_mat = weight.reshape(C_out, C_in)

    T = _pick_tile(HW)
    S = max(HW // T, 1)
    grid = (N, S)

    # ---- pass 1: conv + per-channel sum / sum-of-squares -------------------
    y, ysum, ysq = pl.pallas_call(
        _conv_stats_kernel,
        out_shape=(
            jax.ShapeDtypeStruct((N, C_out, HW), jnp.float32),
            jax.ShapeDtypeStruct((N, C_out, 1), jnp.float32),
            jax.ShapeDtypeStruct((N, C_out, 1), jnp.float32),
        ),
        grid=grid,
        in_specs=[
            pl.BlockSpec((1, C_in, T), lambda n, s: (n, 0, s)),
            pl.BlockSpec((C_out, C_in), lambda n, s: (0, 0)),  # stays resident
        ],
        out_specs=(
            pl.BlockSpec((1, C_out, T), lambda n, s: (n, 0, s)),
            pl.BlockSpec((1, C_out, 1), lambda n, s: (n, 0, 0)),
            pl.BlockSpec((1, C_out, 1), lambda n, s: (n, 0, 0)),
        ),
        compiler_params=pltpu.CompilerParams(
            dimension_semantics=("parallel", "arbitrary")),
    )(x3, w_mat)

    # ---- finalize statistics (tiny, plain JAX) ------------------------------
    cnt = jnp.float32(N * HW)
    mean = jnp.sum(ysum[:, :, 0], axis=0) / cnt                    # (C_out,)
    var = jnp.maximum(jnp.sum(ysq[:, :, 0], axis=0) / cnt - mean * mean, 0.0)
    inv_std = jax.lax.rsqrt(var + EPS)
    scale = inv_std.reshape(C_out, 1)
    shift = (-mean * inv_std).reshape(C_out, 1)

    # ---- pass 2: normalize + ReLU -------------------------------------------
    out3 = pl.pallas_call(
        _bn_relu_kernel,
        out_shape=jax.ShapeDtypeStruct((N, C_out, HW), x_nchw.dtype),
        grid=grid,
        in_specs=[
            pl.BlockSpec((1, C_out, T), lambda n, s: (n, 0, s)),
            pl.BlockSpec((C_out, 1), lambda n, s: (0, 0)),
            pl.BlockSpec((C_out, 1), lambda n, s: (0, 0)),
        ],
        out_specs=pl.BlockSpec((1, C_out, T), lambda n, s: (n, 0, s)),
        compiler_params=pltpu.CompilerParams(
            dimension_semantics=("parallel", "parallel")),
    )(y, scale, shift)

    return out3.reshape(N, C_out, H, W)


def _reference(x_nchw, weight, bias):
    # Pure-JAX reference (includes the bias: it must cancel under BN).
    N, C_in, H, W = x_nchw.shape
    C_out = weight.shape[0]
    x_rows = jnp.transpose(x_nchw, (0, 2, 3, 1)).reshape(N * H * W, C_in)
    y = x_rows @ weight.reshape(C_out, C_in).T + bias[None, :]
    mean = jnp.mean(y, axis=0, keepdims=True)
    var = jnp.mean((y - mean) ** 2, axis=0, keepdims=True)
    y = (y - mean) / jnp.sqrt(var + EPS)
    y = jnp.maximum(y, 0.0)
    return y.reshape(N, H, W, C_out).transpose(0, 3, 1, 2)


if __name__ == "__main__":
    key = jax.random.PRNGKey(0)
    k_x, k_w, k_b = jax.random.split(key, 3)

    N, C_in, C_out, H, W = 2, 4, 8, 16, 16

    x = jax.random.normal(k_x, (N, C_in, H, W), dtype=jnp.float32)
    weight = jax.random.normal(k_w, (C_out, C_in, 1, 1), dtype=jnp.float32) * 0.1
    bias = jax.random.normal(k_b, (C_out,), dtype=jnp.float32) * 0.1

    out = conv_bn_relu(x, weight, bias)
    out = jax.block_until_ready(out)

    ref = _reference(x, weight, bias)
    assert out.shape == (N, C_out, H, W)
    assert jnp.allclose(out, ref, atol=1e-4, rtol=1e-4)

    print("KERNEL_OK")
</pallas_src>

<mosaic_0001>
module attributes {stable_mosaic.version = 11 : i64} {
  func.func @_conv_stats_kernel(%arg0: i32, %arg1: i32, %arg2: memref<1x4x256xf32, #tpu.memory_space<vmem>>, %arg3: memref<8x4xf32, #tpu.memory_space<vmem>>, %arg4: memref<1x8x256xf32, #tpu.memory_space<vmem>>, %arg5: memref<1x8x1xf32, #tpu.memory_space<vmem>>, %arg6: memref<1x8x1xf32, #tpu.memory_space<vmem>>) attributes {dimension_semantics = [#tpu.dimension_semantics<parallel>, #tpu.dimension_semantics<arbitrary>], iteration_bounds = array<i64: 2, 1>, scalar_prefetch = 0 : i64, scratch_operands = 0 : i64, tpu.core_type = #tpu.core_type<tc>, window_params = [{transform_indices = @transform_0, window_bounds = array<i64: 1, 4, 256>}, {pipeline_mode = #tpu.pipeline_mode<synchronous>, transform_indices = @transform_1, window_bounds = array<i64: 8, 4>}, {transform_indices = @transform_2, window_bounds = array<i64: 1, 8, 256>}, {transform_indices = @transform_3, window_bounds = array<i64: 1, 8, 1>}, {transform_indices = @transform_4, window_bounds = array<i64: 1, 8, 1>}]} {
    %c0_i32 = arith.constant 0 : i32
    %0 = arith.cmpi eq, %arg1, %c0_i32 : i32
    %1 = arith.extui %0 : i1 to i32
    %c0_i32_0 = arith.constant 0 : i32
    %2 = arith.cmpi ne, %1, %c0_i32_0 : i32
    scf.if %2 {
      %cst_22 = arith.constant 0.000000e+00 : f32
      %22 = vector.broadcast %cst_22 : f32 to vector<1x8x1xf32>
      %c0_23 = arith.constant 0 : index
      %c0_24 = arith.constant 0 : index
      %c0_25 = arith.constant 0 : index
      %23 = vector.load %arg5[%c0_23, %c0_24, %c0_25] : memref<1x8x1xf32, #tpu.memory_space<vmem>>, vector<1x8x1xf32>
      tpu.vector_store %arg5[%c0_23, %c0_24, %c0_25], %22 {strides = array<i32>} : memref<1x8x1xf32, #tpu.memory_space<vmem>>, vector<1x8x1xf32>,
      %cst_26 = arith.constant 0.000000e+00 : f32
      %24 = vector.broadcast %cst_26 : f32 to vector<1x8x1xf32>
      %c0_27 = arith.constant 0 : index
      %c0_28 = arith.constant 0 : index
      %c0_29 = arith.constant 0 : index
      %25 = vector.load %arg6[%c0_27, %c0_28, %c0_29] : memref<1x8x1xf32, #tpu.memory_space<vmem>>, vector<1x8x1xf32>
      tpu.vector_store %arg6[%c0_27, %c0_28, %c0_29], %24 {strides = array<i32>} : memref<1x8x1xf32, #tpu.memory_space<vmem>>, vector<1x8x1xf32>,
    } else {
    }
    %c0 = arith.constant 0 : index
    %c0_1 = arith.constant 0 : index
    %c0_2 = arith.constant 0 : index
    %3 = vector.load %arg2[%c0, %c0_1, %c0_2] : memref<1x4x256xf32, #tpu.memory_space<vmem>>, vector<1x4x256xf32>
    %4 = vector.shape_cast %3 : vector<1x4x256xf32> to vector<4x256xf32>
    %c0_3 = arith.constant 0 : index
    %c0_4 = arith.constant 0 : index
    %5 = vector.load %arg3[%c0_3, %c0_4] : memref<8x4xf32, #tpu.memory_space<vmem>>, vector<8x4xf32>
    %cst = arith.constant dense<0.000000e+00> : vector<8x256xf32>
    %6 = tpu.matmul %5, %4, %cst {dimension_numbers = #tpu.dot_dimension_numbers<[1], [0], [0], [1], [0, 0, 1, 1], [], []>} : vector<8x4xf32>, vector<4x256xf32>, vector<8x256xf32> -> vector<8x256xf32>
    %7 = vector.shape_cast %6 : vector<8x256xf32> to vector<1x8x256xf32>
    %c0_5 = arith.constant 0 : index
    %c0_6 = arith.constant 0 : index
    %c0_7 = arith.constant 0 : index
    %8 = vector.load %arg4[%c0_5, %c0_6, %c0_7] : memref<1x8x256xf32, #tpu.memory_space<vmem>>, vector<1x8x256xf32>
    tpu.vector_store %arg4[%c0_5, %c0_6, %c0_7], %7 {strides = array<i32>} : memref<1x8x256xf32, #tpu.memory_space<vmem>>, vector<1x8x256xf32>,
    %c0_8 = arith.constant 0 : index
    %c0_9 = arith.constant 0 : index
    %c0_10 = arith.constant 0 : index
    %9 = vector.load %arg5[%c0_8, %c0_9, %c0_10] : memref<1x8x1xf32, #tpu.memory_space<vmem>>, vector<1x8x1xf32>
    %cst_11 = arith.constant dense<0.000000e+00> : vector<8xf32>
    %10 = vector.multi_reduction <add>, %6, %cst_11 [1] : vector<8x256xf32> to vector<8xf32>
    %11 = vector.shape_cast %10 : vector<8xf32> to vector<8x1xf32>
    %12 = vector.shape_cast %11 : vector<8x1xf32> to vector<1x8x1xf32>
    %13 = arith.addf %9, %12 : vector<1x8x1xf32>
    %c0_12 = arith.constant 0 : index
    %c0_13 = arith.constant 0 : index
    %c0_14 = arith.constant 0 : index
    %14 = vector.load %arg5[%c0_12, %c0_13, %c0_14] : memref<1x8x1xf32, #tpu.memory_space<vmem>>, vector<1x8x1xf32>
    tpu.vector_store %arg5[%c0_12, %c0_13, %c0_14], %13 {strides = array<i32>} : memref<1x8x1xf32, #tpu.memory_space<vmem>>, vector<1x8x1xf32>,
    %c0_15 = arith.constant 0 : index
    %c0_16 = arith.constant 0 : index
    %c0_17 = arith.constant 0 : index
    %15 = vector.load %arg6[%c0_15, %c0_16, %c0_17] : memref<1x8x1xf32, #tpu.memory_space<vmem>>, vector<1x8x1xf32>
    %16 = arith.mulf %6, %6 : vector<8x256xf32>
    %cst_18 = arith.constant dense<0.000000e+00> : vector<8xf32>
    %17 = vector.multi_reduction <add>, %16, %cst_18 [1] : vector<8x256xf32> to vector<8xf32>
    %18 = vector.shape_cast %17 : vector<8xf32> to vector<8x1xf32>
    %19 = vector.shape_cast %18 : vector<8x1xf32> to vector<1x8x1xf32>
    %20 = arith.addf %15, %19 : vector<1x8x1xf32>
    %c0_19 = arith.constant 0 : index
    %c0_20 = arith.constant 0 : index
    %c0_21 = arith.constant 0 : index
    %21 = vector.load %arg6[%c0_19, %c0_20, %c0_21] : memref<1x8x1xf32, #tpu.memory_space<vmem>>, vector<1x8x1xf32>
    tpu.vector_store %arg6[%c0_19, %c0_20, %c0_21], %20 {strides = array<i32>} : memref<1x8x1xf32, #tpu.memory_space<vmem>>, vector<1x8x1xf32>,
    return
  }
  func.func @transform_0(%arg0: i32, %arg1: i32) -> (i32, i32, i32) {
    %c0_i32 = arith.constant 0 : i32
    %c0_i32_0 = arith.constant 0 : i32
    return %arg0, %c0_i32, %arg1 : i32, i32, i32
  }
  func.func @transform_1(%arg0: i32, %arg1: i32) -> (i32, i32) {
    %c0_i32 = arith.constant 0 : i32
    %c0_i32_0 = arith.constant 0 : i32
    %c0_i32_1 = arith.constant 0 : i32
    return %c0_i32, %c0_i32_0 : i32, i32
  }
  func.func @transform_2(%arg0: i32, %arg1: i32) -> (i32, i32, i32) {
    %c0_i32 = arith.constant 0 : i32
    %c0_i32_0 = arith.constant 0 : i32
    return %arg0, %c0_i32, %arg1 : i32, i32, i32
  }
  func.func @transform_3(%arg0: i32, %arg1: i32) -> (i32, i32, i32) {
    %c0_i32 = arith.constant 0 : i32
    %c0_i32_0 = arith.constant 0 : i32
    %c0_i32_1 = arith.constant 0 : i32
    return %arg0, %c0_i32, %c0_i32_0 : i32, i32, i32
  }
  func.func @transform_4(%arg0: i32, %arg1: i32) -> (i32, i32, i32) {
    %c0_i32 = arith.constant 0 : i32
    %c0_i32_0 = arith.constant 0 : i32
    %c0_i32_1 = arith.constant 0 : i32
    return %arg0, %c0_i32, %c0_i32_0 : i32, i32, i32
  }
}

</mosaic_0001>

<llo_original>
// kernel: tpu_custom_call.1
$region0: #{tpu_custom_call.1}
  #allocation0 [shape = 'u32[]', space=smem, size = 0x4, offset = 0x4, fixed_abs, tag = 'smem constant byte address 0x4 - core index']
  #allocation1 [shape = 'u32[144,128]{1,0:T(1,128)}', space=vmem, size = 0x12000, scoped, tag = 'internal scratch']
  %s0 = inlined_call_operand.hbm [shape: f32[2,4,256], index: 0, kind: input, shape index: {}]
  %s1 = inlined_call_operand.vmem [shape: f32[8,4], index: 1, kind: input, shape index: {}]
  %s2 = inlined_call_operand.hbm [shape: f32[2,8,256], index: 2, kind: output, shape index: {0}]
  %s3 = inlined_call_operand.vmem [shape: f32[2,8,1], index: 3, kind: output, shape index: {1}]
  %s4 = inlined_call_operand.vmem [shape: f32[2,8,1], index: 4, kind: output, shape index: {2}]
  %5 = xla_tuple %s2, %s3, %s4
  %s6 = sld [smem:[#allocation0]]
  $region65: #{tpu_custom_call.1} parent=0
    _
  %s8 = ssub.s32 1, %s6
  %s9 = scalar_select 0, %s8, %s6
  $region1: #{tpu_custom_call.1} parent=0
    #allocation2 [shape = 'u8[8192]{0}', space=vmem, size = 0x2000, scoped, tag = 'input window, operand 0']
    #allocation3 [shape = 's32[2]{0}', space=sflag, size = 0x8, scoped, tag = 'scoped memory for tpu_custom_call.1']
    #allocation4 [shape = 's32[2]{0}', space=sflag, size = 0x8, scoped, tag = 'scoped memory for tpu_custom_call.1']
    #allocation5 [shape = 'u8[16384]{0}', space=vmem, size = 0x4000, scoped, tag = 'output window, operand 0']
    %10 = vsyncpa [#allocation3], 0
    %s11 = scalar_lea.sflag [#allocation3], 1
    %12 = vsyncpa %s11, 0
    %13 = vsyncpa [#allocation4], 0
    %s14 = scalar_lea.sflag [#allocation4], 1
    %15 = vsyncpa %s14, 0
    loop: start=0, step=1, limit=4
    $region2: #{tpu_custom_call.1} parent=1 // loop_pre_header
      _
    $region3: #{tpu_custom_call.1} parent=1 // loop_header
      %s17 = sphi 0, %s21
      %p18 = scmp.ge.s32.totalorder %s17, 4
      %s24 = sphi 0, %s36
      %s25 = sphi 0, %s32
      %s26 = sphi 0, %s24
      %s27 = sphi 0, %s25
      %s28 = sphi 0, %s26
      %s29 = sphi 0, %s27
      %s41 = sphi 0, %s43
      %s44 = sphi 0, %s41
      %s45 = sphi 0, %s44
      %s61 = sphi 0, %s45
      %s65 = sphi 0, %s65
      %s67 = sphi 0, %s65
      %s68 = sphi 0, %s67
      %s82 = sphi 0, %s68
      %s90 = sphi 0, %s92
      %s93 = sphi 0, %s90
      %s94 = sphi 0, %s93
      %s110 = sphi 0, %s94
      %s116 = sphi 0, %s118
      %s119 = sphi 0, %s116
      %s120 = sphi 0, %s119
      %s136 = sphi 0, %s120
      %s142 = sphi 0, %s144
      %s145 = sphi 0, %s142
      %s146 = sphi 0, %s145
      %s162 = sphi 0, %s146
    $region4: #{tpu_custom_call.1} parent=1 // loop_header_branch
      %20 = sbr.rel (%p18) target = $region8
    $region5: #{tpu_custom_call.1} parent=1 // loop_body
      %s22 = ssub.s32 %s17, 1
      %s23 = ssub.s32 %s17, 2
      %s30 = sadd.s32 1, %s25
      %p31 = scmp.ge.s32.totalorder %s30, 1
      %s32 = scalar_select %p31, 0, %s30
      %s33 = sadd.s32 1, %s24
      %s34 = scalar_select %p31, %s33, %s24
      %p35 = scmp.ge.s32.totalorder %s34, 2
      %s36 = scalar_select %p35, 0, %s34
      %s37 = ssub.s32 %s24, %s36
      %s38 = ssub.s32 %s25, %s32
      %s39 = sor.u32 %s37, %s38
      %p40 = scmp.eq.s32.totalorder %s39, 0
      %s42 = sadd.s32 %s41, 1
      %s43 = scalar_select %p40, %s41, %s42
      %p46 = pneg %p40
      %p47 = scmp.eq.s32.totalorder %s17, 1
      %p48 = por %p46, %p47
      %p49 = scmp.ne.s32.totalorder %s41, %s44
      %p50 = scmp.eq.s32.totalorder %s17, 0
      %p51 = por %p49, %p50
      %p52 = scmp.ne.s32.totalorder %s41, %s44
      %p53 = scmp.eq.s32.totalorder %s22, 1
      %p54 = por %p52, %p53
      %p55 = scmp.ne.s32.totalorder %s44, %s45
      %p56 = scmp.eq.s32.totalorder %s22, 0
      %p57 = por %p55, %p56
      %p58 = scmp.ne.s32.totalorder %s44, %s45
      %p59 = scmp.eq.s32.totalorder %s23, 1
      %p60 = por %p58, %p59
      %p62 = scmp.ne.s32.totalorder %s45, %s61
      %p63 = scmp.eq.s32.totalorder %s23, 0
      %p64 = por %p62, %p63
      %s66 = sadd.s32 %s65, 1
      %p69 = scmp.eq.s32.totalorder %s17, 1
      %p70 = scmp.ne.s32.totalorder %s65, %s67
      %p71 = scmp.eq.s32.totalorder %s17, 0
      %p72 = por %p70, %p71
      %p73 = scmp.ne.s32.totalorder %s65, %s67
      %p74 = scmp.eq.s32.totalorder %s22, 1
      %p75 = por %p73, %p74
      %p76 = scmp.ne.s32.totalorder %s67, %s68
      %p77 = scmp.eq.s32.totalorder %s22, 0
      %p78 = por %p76, %p77
      %p79 = scmp.ne.s32.totalorder %s67, %s68
      %p80 = scmp.eq.s32.totalorder %s23, 1
      %p81 = por %p79, %p80
      %p83 = scmp.ne.s32.totalorder %s68, %s82
      %p84 = scmp.eq.s32.totalorder %s23, 0
      %p85 = por %p83, %p84
      %s86 = ssub.s32 %s24, %s36
      %s87 = ssub.s32 %s25, %s32
      %s88 = sor.u32 %s86, %s87
      %p89 = scmp.eq.s32.totalorder %s88, 0
      %s91 = sadd.s32 %s90, 1
      %s92 = scalar_select %p89, %s90, %s91
      %p95 = pneg %p89
      %p96 = scmp.eq.s32.totalorder %s17, 1
      %p97 = por %p95, %p96
      %p98 = scmp.ne.s32.totalorder %s90, %s93
      %p99 = scmp.eq.s32.totalorder %s17, 0
      %p100 = por %p98, %p99
      %p101 = scmp.ne.s32.totalorder %s90, %s93
      %p102 = scmp.eq.s32.totalorder %s22, 1
      %p103 = por %p101, %p102
      %p104 = scmp.ne.s32.totalorder %s93, %s94
      %p105 = scmp.eq.s32.totalorder %s22, 0
      %p106 = por %p104, %p105
      %p107 = scmp.ne.s32.totalorder %s93, %s94
      %p108 = scmp.eq.s32.totalorder %s23, 1
      %p109 = por %p107, %p108
      %p111 = scmp.ne.s32.totalorder %s94, %s110
      %p112 = scmp.eq.s32.totalorder %s23, 0
      %p113 = por %p111, %p112
      %s114 = ssub.s32 %s24, %s36
      %p115 = scmp.eq.s32.totalorder %s114, 0
      %s117 = sadd.s32 %s116, 1
      %s118 = scalar_select %p115, %s116, %s117
      %p121 = pneg %p115
      %p122 = scmp.eq.s32.totalorder %s17, 1
      %p123 = por %p121, %p122
      %p124 = scmp.ne.s32.totalorder %s116, %s119
      %p125 = scmp.eq.s32.totalorder %s17, 0
      %p126 = por %p124, %p125
      %p127 = scmp.ne.s32.totalorder %s116, %s119
      %p128 = scmp.eq.s32.totalorder %s22, 1
      %p129 = por %p127, %p128
      %p130 = scmp.ne.s32.totalorder %s119, %s120
      %p131 = scmp.eq.s32.totalorder %s22, 0
      %p132 = por %p130, %p131
      %p133 = scmp.ne.s32.totalorder %s119, %s120
      %p134 = scmp.eq.s32.totalorder %s23, 1
      %p135 = por %p133, %p134
      %p137 = scmp.ne.s32.totalorder %s120, %s136
      %p138 = scmp.eq.s32.totalorder %s23, 0
      %p139 = por %p137, %p138
      %s140 = ssub.s32 %s24, %s36
      %p141 = scmp.eq.s32.totalorder %s140, 0
      %s143 = sadd.s32 %s142, 1
      %s144 = scalar_select %p141, %s142, %s143
      %p147 = pneg %p141
      %p148 = scmp.eq.s32.totalorder %s17, 1
      %p149 = por %p147, %p148
      %p150 = scmp.ne.s32.totalorder %s142, %s145
      %p151 = scmp.eq.s32.totalorder %s17, 0
      %p152 = por %p150, %p151
      %p153 = scmp.ne.s32.totalorder %s142, %s145
      %p154 = scmp.eq.s32.totalorder %s22, 1
      %p155 = por %p153, %p154
      %p156 = scmp.ne.s32.totalorder %s145, %s146
      %p157 = scmp.eq.s32.totalorder %s22, 0
      %p158 = por %p156, %p157
      %p159 = scmp.ne.s32.totalorder %s145, %s146
      %p160 = scmp.eq.s32.totalorder %s23, 1
      %p161 = por %p159, %p160
      %p163 = scmp.ne.s32.totalorder %s146, %s162
      %p164 = scmp.eq.s32.totalorder %s23, 0
      %p165 = por %p163, %p164
      %p166 = scmp.le.s32.totalorder 1, %s17
      %p167 = scmp.lt.s32.totalorder %s17, 3
      %p168 = pnand %p166, %p167
      %p169 = pneg %p168
      // Predicated region
      $region9: #{tpu_custom_call.1} parent=5 // pred_check
        _
      $region10: #{tpu_custom_call.1} parent=5 // pred_check_branch
        %171 = sbr.rel (%p168) target = $region12
      $region11: #{tpu_custom_call.1} parent=5 // pred_region
        %s172 = ssub.s32 %s17, 1
        // Predicated region
        $region13: #{tpu_custom_call.1} parent=11 // pred_check
          %p173 = pneg %p78
        $region14: #{tpu_custom_call.1} parent=11 // pred_check_branch
          %175 = sbr.rel (%p173) target = $region16
        $region15: #{tpu_custom_call.1} parent=11 // pred_region
          _
        $region16: #{tpu_custom_call.1} parent=11 // pred_fallthru
          _
      $region12: #{tpu_custom_call.1} parent=5 // pred_fallthru
        _
      %p176 = scmp.lt.s32.totalorder %s17, 2
      // Predicated region
      $region17: #{tpu_custom_call.1} parent=5 // pred_check
        %p177 = pneg %p176
      $region18: #{tpu_custom_call.1} parent=5 // pred_check_branch
        %179 = sbr.rel (%p177) target = $region20
      $region19: #{tpu_custom_call.1} parent=5 // pred_region
        // Predicated region
        $region21: #{tpu_custom_call.1} parent=19 // pred_check
          %p180 = pneg %p51
        $region22: #{tpu_custom_call.1} parent=19 // pred_check_branch
          %182 = sbr.rel (%p180) target = $region24
        $region23: #{tpu_custom_call.1} parent=19 // pred_region
          %s183 = sand.u32 %s41, 1
          %s184 = scalar_lea.sflag [#allocation3], %s183
          %s185 = sand.u32 %s41, 1
          %s186 = smul.addr %s185, 8
          %s187 = scalar_lea.vmem [#allocation2], %s186
          %s188 = smul.u32 2, %s25
          %s190 = ssub.s32 128, 128
          %191 = vsyncadd %s184, %s190
          %s192 = smul.addr %s24, 2
          %s193 = sadd.s32 %s188, %s192
          %s194 = smul.addr %s193, 64
          %s195 = scalar_lea.hbm %s0, %s194
          %s197 = sshll.u32 %s187, 4
          %s198 = int_to_ptr.vmem [resolvable:$true] %s197
          %200 = dma.hbm_to_vmem [thread:$0]  %s195, 128, %s198, %s184
        $region24: #{tpu_custom_call.1} parent=19 // pred_fallthru
          _
      $region20: #{tpu_custom_call.1} parent=5 // pred_fallthru
        _
      %p201 = scmp.le.s32.totalorder 1, %s17
      %p202 = scmp.lt.s32.totalorder %s17, 3
      %p203 = pnand %p201, %p202
      %p204 = pneg %p203
      // Predicated region
      $region25: #{tpu_custom_call.1} parent=5 // pred_check
        _
      $region26: #{tpu_custom_call.1} parent=5 // pred_check_branch
        %206 = sbr.rel (%p203) target = $region28
      $region27: #{tpu_custom_call.1} parent=5 // pred_region
        %s207 = ssub.s32 %s17, 1
        %s208 = sand.u32 %s44, 1
        %s209 = scalar_lea.sflag [#allocation3], %s208
        %s210 = sand.u32 %s44, 1
        %s211 = smul.addr %s210, 8
        %s212 = scalar_lea.vmem [#allocation2], %s211
        // Predicated region
        $region29: #{tpu_custom_call.1} parent=27 // pred_check
          %p213 = pneg %p57
        $region30: #{tpu_custom_call.1} parent=27 // pred_check_branch
          %215 = sbr.rel (%p213) target = $region32
        $region31: #{tpu_custom_call.1} parent=27 // pred_region
          %216 = dma.done %s209, 128
        $region32: #{tpu_custom_call.1} parent=27 // pred_fallthru
          _
        %s217 = sand.u32 %s44, 1
        %s218 = scalar_lea.sflag [#allocation3], %s217
        %s219 = sand.u32 %s44, 1
        %s220 = smul.addr %s219, 8
        %s221 = scalar_lea.vmem [#allocation2], %s220
        %p222 = pneg %p57
        %p223 = pneg %p54
        %p224 = pneg %p78
        %p225 = pneg %p75
        %p226 = pneg %p106
        %p227 = pneg %p103
        %s228 = sand.u32 %s93, 1
        %s229 = scalar_lea.sflag [#allocation4], %s228
        %s230 = sand.u32 %s93, 1
        %s231 = smul.addr %s230, 16
        %s232 = scalar_lea.vmem [#allocation5], %s231
        %p233 = pneg %p132
        %p234 = pneg %p129
        %p235 = scmp.lt.s32.totalorder %s26, 1
        %s236 = scalar_select %p235, %s26, 1
        %s237 = smul.addr %s236, 8
        %s238 = scalar_lea.vmem %s3, %s237
        %p239 = pneg %p158
        %p240 = pneg %p155
        %p241 = scmp.lt.s32.totalorder %s26, 1
        %s242 = scalar_select %p241, %s26, 1
        %s243 = smul.addr %s242, 8
        %s244 = scalar_lea.vmem %s4, %s243
        %s245 = smul.u32 2, %s27
        %s246 = smul.u32 2, %s27
        %p247 = scmp.lt.s32.totalorder %s26, 1
        %s248 = scalar_select %p247, %s26, 1
        %s249 = smul.addr %s248, 8
        %s250 = scalar_lea.vmem %s3, %s249
        %p251 = scmp.lt.s32.totalorder %s26, 1
        %s252 = scalar_select %p251, %s26, 1
        %s253 = smul.addr %s252, 8
        %s254 = scalar_lea.vmem %s4, %s253
        %p255 = scmp.eq.s32.totalorder %s27, 0
        // Predicated region
        $region33: #{tpu_custom_call.1} parent=27 // pred_check
          %p256 = pneg %p255
        $region34: #{tpu_custom_call.1} parent=27 // pred_check_branch
          %258 = sbr.rel (%p256) target = $region36
        $region35: #{tpu_custom_call.1} parent=27 // pred_region
          %vm259 = vcmask 7168
          %260 = vst.msk [vmem:[%s250] sm:$0xff] %vm259, 0.0
          %261 = vst.msk [vmem:[%s254] sm:$0xff] %vm259, 0.0
        $region36: #{tpu_custom_call.1} parent=27 // pred_fallthru
          _
        %v262 = vld [vmem:[%s212] sm:$0xff]
        %v263 = vld [vmem:[%s1] sm:$0xff]
        %v265 = vcombine.high %v262, %v262
        %vm266 = vcmask 31744
        %v268 = vsel %vm266, %v263, 0
        %vm270 = vcmask 1043456
        %v271 = vsel %vm270, %v262, 0
        %v273 = vsel %vm270, %v265, 0
        %275 = vmatprep.subr.mxu0 %v273
        %276 = vmatpush1.msra.mxu0 %v271
        %277 = vmatprep.subr.mxu0 0.0
        %278 = vmatpush1.msra.mxu0 0.0
        %279 = vmatprep.subr.mxu0 0.0
        %280 = vmatpush1.msra.mxu0 0.0
        %281 = vmatprep.subr.mxu0 0.0
        %282 = vmatpush1.msra.mxu0 0.0
        %283 = vmatprep.subr.mxu0 0.0
        %284 = vmatpush1.msra.mxu0 0.0
        %285 = vmatprep.subr.mxu0 0.0
        %286 = vmatpush1.msra.mxu0 0.0
        %287 = vmatprep.subr.mxu0 0.0
        %288 = vmatpush1.msra.mxu0 0.0
        %289 = vmatprep.subr.mxu0 0.0
        %290 = vmatpush1.msra.mxu0 0.0
        %291 = vmatprep.subr.mxu0 0.0
        %292 = vmatpush1.msra.mxu0 0.0
        %293 = vmatprep.subr.mxu0 0.0
        %294 = vmatpush1.msra.mxu0 0.0
        %295 = vmatprep.subr.mxu0 0.0
        %296 = vmatpush1.msra.mxu0 0.0
        %297 = vmatprep.subr.mxu0 0.0
        %298 = vmatpush1.msra.mxu0 0.0
        %299 = vmatprep.subr.mxu0 0.0
        %300 = vmatpush1.msra.mxu0 0.0
        %301 = vmatprep.subr.mxu0 0.0
        %302 = vmatpush1.msra.mxu0 0.0
        %303 = vmatprep.subr.mxu0 0.0
        %304 = vmatpush1.msra.mxu0 0.0
        %305 = vmatprep.subr.mxu0 0.0
        %306 = vmatpush1.msra.mxu0 0.0
        %307 = vmatprep.subr.mxu0 0.0
        %308 = vmatpush1.msra.mxu0 0.0
        %309 = vmatprep.subr.mxu0 0.0
        %310 = vmatpush1.msra.mxu0 0.0
        %311 = vmatprep.subr.mxu0 0.0
        %312 = vmatpush1.msra.mxu0 0.0
        %313 = vmatprep.subr.mxu0 0.0
        %314 = vmatpush1.msra.mxu0 0.0
        %315 = vmatprep.subr.mxu0 0.0
        %316 = vmatpush1.msra.mxu0 0.0
        %317 = vmatprep.subr.mxu0 0.0
        %318 = vmatpush1.msra.mxu0 0.0
        %319 = vmatprep.subr.mxu0 0.0
        %320 = vmatpush1.msra.mxu0 0.0
        %321 = vmatprep.subr.mxu0 0.0
        %322 = vmatpush1.msra.mxu0 0.0
        %323 = vmatprep.subr.mxu0 0.0
        %324 = vmatpush1.msra.mxu0 0.0
        %325 = vmatprep.subr.mxu0 0.0
        %326 = vmatpush1.msra.mxu0 0.0
        %327 = vmatprep.subr.mxu0 0.0
        %328 = vmatpush1.msra.mxu0 0.0
        %329 = vmatprep.subr.mxu0 0.0
        %330 = vmatpush1.msra.mxu0 0.0
        %331 = vmatprep.subr.mxu0 0.0
        %332 = vmatpush1.msra.mxu0 0.0
        %333 = vmatprep.subr.mxu0 0.0
        %334 = vmatpush1.msra.mxu0 0.0
        %335 = vmatprep.subr.mxu0 0.0
        %336 = vmatpush1.msra.mxu0 0.0
        %337 = vmatprep.subr.mxu0 0.0
        %338 = vmatpush1.msra.mxu0 0.0
        %339 = vmatprep.mubr.f32.mxu0 0.0
        %340 = vmatmul.mubr.f32.gmra.mrb[0].mxu0 %v268
        %v341 = vpop.f32.mrb[0].mxu0
        %v342 = vadd.f32 0.0, %v341
        %v343 = vpop.f32.mrb[0].mxu0
        %v344 = vadd.f32 0.0, %v343
        %345 = vdwg.mxu0
        %346 = vst [vmem:[%s232] sm:$0xff] %v342
        %347 = vst [vmem:[%s232 + $0x8] sm:$0xff] %v344
        %v348 = vld [vmem:[%s250] sm:$0xff]
        %v349 = vadd.f32 %v342, %v344
        %350 = vadd.xlane.f32.xlu0 %v349
        %v351 = vpop.xlane.xlu0 %350
        %v352 = vadd.f32 %v348, %v351
        %vm353 = vcmask 7168
        %354 = vst.msk [vmem:[%s250] sm:$0xff] %vm353, %v352
        %v355 = vld [vmem:[%s254] sm:$0xff]
        %v356 = vmul.f32 %v342, %v342
        %v357 = vmul.f32 %v344, %v344
        %v358 = vadd.f32 %v356, %v357
        %359 = vadd.xlane.f32.xlu0 %v358
        %v360 = vpop.xlane.xlu0 %359
        %v361 = vadd.f32 %v355, %v360
        %362 = vst.msk [vmem:[%s254] sm:$0xff] %vm353, %v361
        %s363 = sand.u32 %s93, 1
        %s364 = scalar_lea.sflag [#allocation4], %s363
        %s365 = sand.u32 %s93, 1
        %s366 = smul.addr %s365, 16
        %s367 = scalar_lea.vmem [#allocation5], %s366
        %p368 = scmp.lt.s32.totalorder %s26, 1
        %s369 = scalar_select %p368, %s26, 1
        %s370 = smul.addr %s369, 8
        %s371 = scalar_lea.vmem %s3, %s370
        %p372 = scmp.lt.s32.totalorder %s26, 1
        %s373 = scalar_select %p372, %s26, 1
        %s374 = smul.addr %s373, 8
        %s375 = scalar_lea.vmem %s4, %s374
        // Predicated region
        $region37: #{tpu_custom_call.1} parent=27 // pred_check
          %p376 = pneg %p103
        $region38: #{tpu_custom_call.1} parent=27 // pred_check_branch
          %378 = sbr.rel (%p376) target = $region40
        $region39: #{tpu_custom_call.1} parent=27 // pred_region
          %s379 = smul.u32 2, %s27
          %s381 = ssub.s32 256, 256
          %382 = vsyncadd %s364, %s381
          %s383 = smul.addr %s26, 2
          %s384 = sadd.s32 %s379, %s383
          %s385 = smul.addr %s384, 128
          %s386 = scalar_lea.hbm %s2, %s385
          %s388 = sshll.u32 %s367, 4
          %s389 = int_to_ptr.vmem [resolvable:$true] %s388
          %391 = dma.vmem_to_hbm [thread:$0]  %s389, 256, %s386, %s364
        $region40: #{tpu_custom_call.1} parent=27 // pred_fallthru
          _
        // Predicated region
        $region41: #{tpu_custom_call.1} parent=27 // pred_check
          %p392 = pneg %p129
        $region42: #{tpu_custom_call.1} parent=27 // pred_check_branch
          %394 = sbr.rel (%p392) target = $region44
        $region43: #{tpu_custom_call.1} parent=27 // pred_region
          _
        $region44: #{tpu_custom_call.1} parent=27 // pred_fallthru
          _
        // Predicated region
        $region45: #{tpu_custom_call.1} parent=27 // pred_check
          %p395 = pneg %p155
        $region46: #{tpu_custom_call.1} parent=27 // pred_check_branch
          %397 = sbr.rel (%p395) target = $region48
        $region47: #{tpu_custom_call.1} parent=27 // pred_region
          _
        $region48: #{tpu_custom_call.1} parent=27 // pred_fallthru
          _
      $region28: #{tpu_custom_call.1} parent=5 // pred_fallthru
        _
      %p398 = scmp.le.s32.totalorder 2, %s17
      // Predicated region
      $region49: #{tpu_custom_call.1} parent=5 // pred_check
        %p399 = pneg %p398
      $region50: #{tpu_custom_call.1} parent=5 // pred_check_branch
        %401 = sbr.rel (%p399) target = $region52
      $region51: #{tpu_custom_call.1} parent=5 // pred_region
        %s402 = ssub.s32 %s17, 2
        // Predicated region
        $region53: #{tpu_custom_call.1} parent=51 // pred_check
          %p403 = pneg %p109
        $region54: #{tpu_custom_call.1} parent=51 // pred_check_branch
          %405 = sbr.rel (%p403) target = $region56
        $region55: #{tpu_custom_call.1} parent=51 // pred_region
          %s406 = sand.u32 %s94, 1
          %s407 = scalar_lea.sflag [#allocation4], %s406
          %s408 = sand.u32 %s94, 1
          %s409 = smul.addr %s408, 16
          %s410 = scalar_lea.vmem [#allocation5], %s409
          %411 = dma.done %s407, 256
        $region56: #{tpu_custom_call.1} parent=51 // pred_fallthru
          _
        // Predicated region
        $region57: #{tpu_custom_call.1} parent=51 // pred_check
          %p412 = pneg %p135
        $region58: #{tpu_custom_call.1} parent=51 // pred_check_branch
          %414 = sbr.rel (%p412) target = $region60
        $region59: #{tpu_custom_call.1} parent=51 // pred_region
          %p415 = scmp.lt.s32.totalorder %s28, 1
          %s416 = scalar_select %p415, %s28, 1
          %s417 = smul.addr %s416, 8
          %s418 = scalar_lea.vmem %s3, %s417
        $region60: #{tpu_custom_call.1} parent=51 // pred_fallthru
          _
        // Predicated region
        $region61: #{tpu_custom_call.1} parent=51 // pred_check
          %p419 = pneg %p161
        $region62: #{tpu_custom_call.1} parent=51 // pred_check_branch
          %421 = sbr.rel (%p419) target = $region64
        $region63: #{tpu_custom_call.1} parent=51 // pred_region
          %p422 = scmp.lt.s32.totalorder %s28, 1
          %s423 = scalar_select %p422, %s28, 1
          %s424 = smul.addr %s423, 8
          %s425 = scalar_lea.vmem %s4, %s424
        $region64: #{tpu_custom_call.1} parent=51 // pred_fallthru
          _
      $region52: #{tpu_custom_call.1} parent=5 // pred_fallthru
        _
    $region6: #{tpu_custom_call.1} parent=1 // loop_footer
      %s21 = sadd.s32 1, %s17
    $region7: #{tpu_custom_call.1} parent=1 // loop_footer_branch
      %16 = sbr.rel target = $region3
    $region8: #{tpu_custom_call.1} parent=1 // loop_exit
      _
    %426 = vsyncpa [#allocation3], 1
    %s427 = scalar_lea.sflag [#allocation3], 1
    %428 = vsyncpa %s427, 1
    %429 = vsyncpa [#allocation4], 1
    %s430 = scalar_lea.sflag [#allocation4], 1
    %431 = vsyncpa %s430, 1

</llo_original>
